<compile_context>
chip_gen: v7x
topology: tpu7x:2x2x1
jax: 0.10.0
libtpu: 0.0.40
codegen_flags: <defaults>
</compile_context>

<pallas_src>
import functools

import jax
import jax.numpy as jnp
from jax.experimental import pallas as pl
from jax.experimental.pallas import tpu as pltpu

SUBLANE = 8


def _round_up(n, m):
    return ((n + m - 1) // m) * m


def dqn_kernel(x_ref, w1_ref, b1_ref, w2_ref, b2_ref, w3_ref, b3_ref, o_ref):
    # Keep caller's dtype (no silent upcast); accumulate every matmul in f32.
    x = x_ref[...]

    # fc1 + ReLU
    h1 = jnp.dot(x, w1_ref[...], preferred_element_type=jnp.float32) + b1_ref[...]
    h1 = jnp.maximum(h1, 0.0)

    # fc2 + ReLU (cast activations to the weight dtype so bf16 weights hit the
    # bf16 MXU path; no-op for f32 weights)
    h2 = jnp.dot(h1.astype(w2_ref.dtype), w2_ref[...],
                 preferred_element_type=jnp.float32) + b2_ref[...]
    h2 = jnp.maximum(h2, 0.0)

    # fc3 (no activation) — narrow output, stored directly (no lane padding).
    out = jnp.dot(h2.astype(w3_ref.dtype), w3_ref[...],
                  preferred_element_type=jnp.float32) + b3_ref[...]
    o_ref[...] = out.astype(o_ref.dtype)


@functools.partial(jax.jit, static_argnames=("block_batch",))
def dqn_forward(x, params, *, block_batch=2048):
    """Forward pass. x: (batch, state_dim). Returns (batch, action_dim)."""
    w1, b1, w2, b2, w3, b3 = params
    batch, state_dim = x.shape
    action_dim = w3.shape[1]

    # --- batch tiling -------------------------------------------------------
    batch_8 = _round_up(batch, SUBLANE)
    # Aim for an even >=2-way split (when batch is large enough) so that the
    # "parallel" batch axis actually uses both TensorCores on v7x megacore.
    half = _round_up(pl.cdiv(batch_8, 2), SUBLANE)
    tb = max(SUBLANE, min(block_batch, half))
    padded_batch = _round_up(batch_8, tb)
    if padded_batch != batch:
        x_in = jnp.pad(x, ((0, padded_batch - batch), (0, 0)))
    else:
        x_in = x

    grid = (padded_batch // tb,)

    # Weights/biases: constant block index -> loaded once, VMEM-resident
    # across all grid steps (no re-DMA).
    def resident(a):
        return pl.BlockSpec(a.shape, lambda i: (0,) * a.ndim)

    out = pl.pallas_call(
        dqn_kernel,
        out_shape=jax.ShapeDtypeStruct((padded_batch, action_dim), x.dtype),
        grid=grid,
        in_specs=[
            pl.BlockSpec((tb, state_dim), lambda i: (i, 0)),   # x: batch-tiled
            resident(w1), resident(b1),
            resident(w2), resident(b2),
            resident(w3), resident(b3),
        ],
        # Narrow output block: last dim == full array last dim (action_dim),
        # second-to-last (tb) is a multiple of 8 -> legal, one small
        # contiguous burst per tile instead of a 128-lane padded slab.
        out_specs=pl.BlockSpec((tb, action_dim), lambda i: (i, 0)),
        compiler_params=pltpu.CompilerParams(
            # batch tiles are independent -> shard across TCs on v7x megacore
            dimension_semantics=("parallel",),
        ),
    )(x_in, w1, b1, w2, b2, w3, b3)

    if padded_batch != batch:
        out = out[:batch]
    return out


def init_params(key, state_dim, action_dim, dtype=jnp.float32):
    """One-time param construction, PyTorch nn.Linear-style init.

    All layout work (kernel-ready (in,out) weights, (1,out) biases, dtype
    casts) happens here, once — nothing is padded/cast per forward call.
    """
    def linear(key, fan_in, fan_out):
        kw, kb = jax.random.split(key)
        bound = 1.0 / jnp.sqrt(fan_in)
        w = jax.random.uniform(kw, (fan_in, fan_out), jnp.float32, -bound, bound)
        b = jax.random.uniform(kb, (1, fan_out), jnp.float32, -bound, bound)
        return w.astype(dtype), b.astype(jnp.float32)   # biases stay f32

    k1, k2, k3 = jax.random.split(key, 3)
    w1, b1 = linear(k1, state_dim, 32)
    w2, b2 = linear(k2, 32, 64)
    w3, b3 = linear(k3, 64, action_dim)
    return (w1, b1, w2, b2, w3, b3)


def dqn_reference(x, params):
    w1, b1, w2, b2, w3, b3 = params
    xf = x.astype(jnp.float32)
    h1 = jnp.maximum(xf @ w1.astype(jnp.float32) + b1, 0.0)
    h2 = jnp.maximum(h1 @ w2.astype(jnp.float32) + b2, 0.0)
    return h2 @ w3.astype(jnp.float32) + b3


if __name__ == "__main__":
    key = jax.random.PRNGKey(0)
    k_x1, k_x2, k_p = jax.random.split(key, 3)

    state_dim, action_dim = 4, 2   # CartPole-like dims
    params = init_params(k_p, state_dim, action_dim)

    # Small batch (single tile, grid=(1,)) — typical DQN acting-path shape.
    batch_small = 8
    x_small = jax.random.normal(k_x1, (batch_small, state_dim), jnp.float32)
    out_small = jax.block_until_ready(dqn_forward(x_small, params))
    ref_small = dqn_reference(x_small, params)
    assert out_small.shape == (batch_small, action_dim)
    assert jnp.allclose(out_small, ref_small, atol=1e-5, rtol=1e-5), \
        "small-batch mismatch vs reference"

    # Larger, ragged batch — exercises batch tiling (grid=2) and edge padding.
    batch_big = 1000
    x_big = jax.random.normal(k_x2, (batch_big, state_dim), jnp.float32)
    out_big = jax.block_until_ready(dqn_forward(x_big, params))
    ref_big = dqn_reference(x_big, params)
    assert out_big.shape == (batch_big, action_dim)
    assert jnp.allclose(out_big, ref_big, atol=1e-5, rtol=1e-5), \
        "tiled-batch mismatch vs reference"

    print("KERNEL_OK")
</pallas_src>

<mosaic_0001>
module attributes {stable_mosaic.version = 11 : i64} {
  func.func @dqn_kernel(%arg0: i32, %arg1: memref<8x4xf32, #tpu.memory_space<vmem>>, %arg2: memref<4x32xf32, #tpu.memory_space<vmem>>, %arg3: memref<1x32xf32, #tpu.memory_space<vmem>>, %arg4: memref<32x64xf32, #tpu.memory_space<vmem>>, %arg5: memref<1x64xf32, #tpu.memory_space<vmem>>, %arg6: memref<64x2xf32, #tpu.memory_space<vmem>>, %arg7: memref<1x2xf32, #tpu.memory_space<vmem>>, %arg8: memref<8x2xf32, #tpu.memory_space<vmem>>) attributes {dimension_semantics = [#tpu.dimension_semantics<parallel>], iteration_bounds = array<i64: 1>, scalar_prefetch = 0 : i64, scratch_operands = 0 : i64, tpu.core_type = #tpu.core_type<tc>, window_params = [{transform_indices = @transform_0, window_bounds = array<i64: 8, 4>}, {pipeline_mode = #tpu.pipeline_mode<synchronous>, transform_indices = @transform_1, window_bounds = array<i64: 4, 32>}, {pipeline_mode = #tpu.pipeline_mode<synchronous>, transform_indices = @transform_2, window_bounds = array<i64: 1, 32>}, {pipeline_mode = #tpu.pipeline_mode<synchronous>, transform_indices = @transform_3, window_bounds = array<i64: 32, 64>}, {pipeline_mode = #tpu.pipeline_mode<synchronous>, transform_indices = @transform_4, window_bounds = array<i64: 1, 64>}, {pipeline_mode = #tpu.pipeline_mode<synchronous>, transform_indices = @transform_5, window_bounds = array<i64: 64, 2>}, {pipeline_mode = #tpu.pipeline_mode<synchronous>, transform_indices = @transform_6, window_bounds = array<i64: 1, 2>}, {transform_indices = @transform_7, window_bounds = array<i64: 8, 2>}]} {
    %c0 = arith.constant 0 : index
    %c0_0 = arith.constant 0 : index
    %0 = vector.load %arg1[%c0, %c0_0] : memref<8x4xf32, #tpu.memory_space<vmem>>, vector<8x4xf32>
    %c0_1 = arith.constant 0 : index
    %c0_2 = arith.constant 0 : index
    %1 = vector.load %arg2[%c0_1, %c0_2] : memref<4x32xf32, #tpu.memory_space<vmem>>, vector<4x32xf32>
    %cst = arith.constant dense<0.000000e+00> : vector<8x32xf32>
    %2 = tpu.matmul %0, %1, %cst {dimension_numbers = #tpu.dot_dimension_numbers<[1], [0], [0], [1], [0, 0, 1, 1], [], []>} : vector<8x4xf32>, vector<4x32xf32>, vector<8x32xf32> -> vector<8x32xf32>
    %c0_3 = arith.constant 0 : index
    %c0_4 = arith.constant 0 : index
    %3 = vector.load %arg3[%c0_3, %c0_4] : memref<1x32xf32, #tpu.memory_space<vmem>>, vector<1x32xf32>
    %4 = vector.broadcast %3 : vector<1x32xf32> to vector<8x32xf32>
    %5 = arith.addf %2, %4 : vector<8x32xf32>
    %cst_5 = arith.constant 0.000000e+00 : f32
    %6 = vector.broadcast %cst_5 : f32 to vector<8x32xf32>
    %7 = arith.maximumf %5, %6 : vector<8x32xf32>
    %c0_6 = arith.constant 0 : index
    %c0_7 = arith.constant 0 : index
    %8 = vector.load %arg4[%c0_6, %c0_7] : memref<32x64xf32, #tpu.memory_space<vmem>>, vector<32x64xf32>
    %cst_8 = arith.constant dense<0.000000e+00> : vector<8x64xf32>
    %9 = tpu.matmul %7, %8, %cst_8 {dimension_numbers = #tpu.dot_dimension_numbers<[1], [0], [0], [1], [0, 0, 1, 1], [], []>} : vector<8x32xf32>, vector<32x64xf32>, vector<8x64xf32> -> vector<8x64xf32>
    %c0_9 = arith.constant 0 : index
    %c0_10 = arith.constant 0 : index
    %10 = vector.load %arg5[%c0_9, %c0_10] : memref<1x64xf32, #tpu.memory_space<vmem>>, vector<1x64xf32>
    %11 = vector.broadcast %10 : vector<1x64xf32> to vector<8x64xf32>
    %12 = arith.addf %9, %11 : vector<8x64xf32>
    %cst_11 = arith.constant 0.000000e+00 : f32
    %13 = vector.broadcast %cst_11 : f32 to vector<8x64xf32>
    %14 = arith.maximumf %12, %13 : vector<8x64xf32>
    %c0_12 = arith.constant 0 : index
    %c0_13 = arith.constant 0 : index
    %15 = vector.load %arg6[%c0_12, %c0_13] : memref<64x2xf32, #tpu.memory_space<vmem>>, vector<64x2xf32>
    %cst_14 = arith.constant dense<0.000000e+00> : vector<8x2xf32>
    %16 = tpu.matmul %14, %15, %cst_14 {dimension_numbers = #tpu.dot_dimension_numbers<[1], [0], [0], [1], [0, 0, 1, 1], [], []>} : vector<8x64xf32>, vector<64x2xf32>, vector<8x2xf32> -> vector<8x2xf32>
    %c0_15 = arith.constant 0 : index
    %c0_16 = arith.constant 0 : index
    %17 = vector.load %arg7[%c0_15, %c0_16] : memref<1x2xf32, #tpu.memory_space<vmem>>, vector<1x2xf32>
    %18 = vector.broadcast %17 : vector<1x2xf32> to vector<8x2xf32>
    %19 = arith.addf %16, %18 : vector<8x2xf32>
    %c0_17 = arith.constant 0 : index
    %c0_18 = arith.constant 0 : index
    %20 = vector.load %arg8[%c0_17, %c0_18] : memref<8x2xf32, #tpu.memory_space<vmem>>, vector<8x2xf32>
    tpu.vector_store %arg8[%c0_17, %c0_18], %19 {strides = array<i32>} : memref<8x2xf32, #tpu.memory_space<vmem>>, vector<8x2xf32>,
    return
  }
  func.func @transform_0(%arg0: i32) -> (i32, i32) {
    %c0_i32 = arith.constant 0 : i32
    %c0_i32_0 = arith.constant 0 : i32
    return %arg0, %c0_i32 : i32, i32
  }
  func.func @transform_1(%arg0: i32) -> (i32, i32) {
    %c0_i32 = arith.constant 0 : i32
    %c0_i32_0 = arith.constant 0 : i32
    %c0_i32_1 = arith.constant 0 : i32
    return %c0_i32, %c0_i32_0 : i32, i32
  }
  func.func @transform_2(%arg0: i32) -> (i32, i32) {
    %c0_i32 = arith.constant 0 : i32
    %c0_i32_0 = arith.constant 0 : i32
    %c0_i32_1 = arith.constant 0 : i32
    return %c0_i32, %c0_i32_0 : i32, i32
  }
  func.func @transform_3(%arg0: i32) -> (i32, i32) {
    %c0_i32 = arith.constant 0 : i32
    %c0_i32_0 = arith.constant 0 : i32
    %c0_i32_1 = arith.constant 0 : i32
    return %c0_i32, %c0_i32_0 : i32, i32
  }
  func.func @transform_4(%arg0: i32) -> (i32, i32) {
    %c0_i32 = arith.constant 0 : i32
    %c0_i32_0 = arith.constant 0 : i32
    %c0_i32_1 = arith.constant 0 : i32
    return %c0_i32, %c0_i32_0 : i32, i32
  }
  func.func @transform_5(%arg0: i32) -> (i32, i32) {
    %c0_i32 = arith.constant 0 : i32
    %c0_i32_0 = arith.constant 0 : i32
    %c0_i32_1 = arith.constant 0 : i32
    return %c0_i32, %c0_i32_0 : i32, i32
  }
  func.func @transform_6(%arg0: i32) -> (i32, i32) {
    %c0_i32 = arith.constant 0 : i32
    %c0_i32_0 = arith.constant 0 : i32
    %c0_i32_1 = arith.constant 0 : i32
    return %c0_i32, %c0_i32_0 : i32, i32
  }
  func.func @transform_7(%arg0: i32) -> (i32, i32) {
    %c0_i32 = arith.constant 0 : i32
    %c0_i32_0 = arith.constant 0 : i32
    return %arg0, %c0_i32 : i32, i32
  }
}

</mosaic_0001>

<llo_original>
// kernel: dqn_forward.1
$region0: #{dqn_forward.1}
  #allocation0 [shape = 'u32[]', space=smem, size = 0x4, offset = 0x4, fixed_abs, tag = 'smem constant byte address 0x4 - core index']
  #allocation1 [shape = 'u32[144,128]{1,0:T(1,128)}', space=vmem, size = 0x12000, scoped, tag = 'internal scratch']
  %s0 = inlined_call_operand.vmem [shape: f32[8,4], index: 0, kind: input, shape index: {}]
  %s1 = inlined_call_operand.vmem [shape: f32[4,32], index: 1, kind: input, shape index: {}]
  %s2 = inlined_call_operand.vmem [shape: f32[1,32], index: 2, kind: input, shape index: {}]
  %s3 = inlined_call_operand.vmem [shape: f32[32,64], index: 3, kind: input, shape index: {}]
  %s4 = inlined_call_operand.vmem [shape: f32[1,64], index: 4, kind: input, shape index: {}]
  %s5 = inlined_call_operand.vmem [shape: f32[64,2], index: 5, kind: input, shape index: {}]
  %s6 = inlined_call_operand.vmem [shape: f32[1,2], index: 6, kind: input, shape index: {}]
  %s7 = inlined_call_operand.vmem [shape: f32[8,2], index: 7, kind: output, shape index: {}]
  %s8 = sld [smem:[#allocation0]]
  $region38: #{dqn_forward.1} parent=0
    _
  %s10 = ssub.s32 1, %s8
  %s11 = scalar_select 0, %s10, %s8
  // Predicated region
  $region2: #{dqn_forward.1} parent=0 // pred_check
    _
  $region3: #{dqn_forward.1} parent=0 // pred_check_branch
    %13 = sbr.rel (0) target = $region5
  $region4: #{dqn_forward.1} parent=0 // pred_region
    _
  $region5: #{dqn_forward.1} parent=0 // pred_fallthru
    _
  // Predicated region
  $region6: #{dqn_forward.1} parent=0 // pred_check
    _
  $region7: #{dqn_forward.1} parent=0 // pred_check_branch
    %15 = sbr.rel (0) target = $region9
  $region8: #{dqn_forward.1} parent=0 // pred_region
    _
  $region9: #{dqn_forward.1} parent=0 // pred_fallthru
    _
  // Predicated region
  $region10: #{dqn_forward.1} parent=0 // pred_check
    _
  $region11: #{dqn_forward.1} parent=0 // pred_check_branch
    %17 = sbr.rel (0) target = $region13
  $region12: #{dqn_forward.1} parent=0 // pred_region
    _
  $region13: #{dqn_forward.1} parent=0 // pred_fallthru
    _
  // Predicated region
  $region14: #{dqn_forward.1} parent=0 // pred_check
    _
  $region15: #{dqn_forward.1} parent=0 // pred_check_branch
    %19 = sbr.rel (0) target = $region17
  $region16: #{dqn_forward.1} parent=0 // pred_region
    _
  $region17: #{dqn_forward.1} parent=0 // pred_fallthru
    _
  // Predicated region
  $region18: #{dqn_forward.1} parent=0 // pred_check
    _
  $region19: #{dqn_forward.1} parent=0 // pred_check_branch
    %21 = sbr.rel (0) target = $region21
  $region20: #{dqn_forward.1} parent=0 // pred_region
    _
  $region21: #{dqn_forward.1} parent=0 // pred_fallthru
    _
  // Predicated region
  $region22: #{dqn_forward.1} parent=0 // pred_check
    _
  $region23: #{dqn_forward.1} parent=0 // pred_check_branch
    %23 = sbr.rel (0) target = $region25
  $region24: #{dqn_forward.1} parent=0 // pred_region
    _
  $region25: #{dqn_forward.1} parent=0 // pred_fallthru
    _
  // Predicated region
  $region26: #{dqn_forward.1} parent=0 // pred_check
    _
  $region27: #{dqn_forward.1} parent=0 // pred_check_branch
    %25 = sbr.rel (0) target = $region29
  $region28: #{dqn_forward.1} parent=0 // pred_region
    _
  $region29: #{dqn_forward.1} parent=0 // pred_fallthru
    _
  %v26 = vld [vmem:[%s0] sm:$0xff]
  %v27 = vld [vmem:[%s1] sm:$0xf]
  %v28 = vld [vmem:[%s2] sm:$0x1]
  %v30 = vlaneseq
  %v31 = vshrl.u32 %v30, 7
  %v32 = vsub.s32 0, %v31
  %v33 = vrot.slane %v28, %v32
  %vm35 = vcmask 31744
  %v37 = vsel %vm35, %v26, 0
  %vm39 = vcmask 1043456
  %v41 = vsel %vm39, %v27, 0
  %43 = vmatprep.subr.mxu0 0.0
  %44 = vmatpush1.msra.mxu0 %v41
  %45 = vmatprep.subr.mxu0 0.0
  %46 = vmatpush1.msra.mxu0 0.0
  %47 = vmatprep.subr.mxu0 0.0
  %48 = vmatpush1.msra.mxu0 0.0
  %49 = vmatprep.subr.mxu0 0.0
  %50 = vmatpush1.msra.mxu0 0.0
  %51 = vmatprep.subr.mxu0 0.0
  %52 = vmatpush1.msra.mxu0 0.0
  %53 = vmatprep.subr.mxu0 0.0
  %54 = vmatpush1.msra.mxu0 0.0
  %55 = vmatprep.subr.mxu0 0.0
  %56 = vmatpush1.msra.mxu0 0.0
  %57 = vmatprep.subr.mxu0 0.0
  %58 = vmatpush1.msra.mxu0 0.0
  %59 = vmatprep.subr.mxu0 0.0
  %60 = vmatpush1.msra.mxu0 0.0
  %61 = vmatprep.subr.mxu0 0.0
  %62 = vmatpush1.msra.mxu0 0.0
  %63 = vmatprep.subr.mxu0 0.0
  %64 = vmatpush1.msra.mxu0 0.0
  %65 = vmatprep.subr.mxu0 0.0
  %66 = vmatpush1.msra.mxu0 0.0
  %67 = vmatprep.subr.mxu0 0.0
  %68 = vmatpush1.msra.mxu0 0.0
  %69 = vmatprep.subr.mxu0 0.0
  %70 = vmatpush1.msra.mxu0 0.0
  %71 = vmatprep.subr.mxu0 0.0
  %72 = vmatpush1.msra.mxu0 0.0
  %73 = vmatprep.subr.mxu0 0.0
  %74 = vmatpush1.msra.mxu0 0.0
  %75 = vmatprep.subr.mxu0 0.0
  %76 = vmatpush1.msra.mxu0 0.0
  %77 = vmatprep.subr.mxu0 0.0
  %78 = vmatpush1.msra.mxu0 0.0
  %79 = vmatprep.subr.mxu0 0.0
  %80 = vmatpush1.msra.mxu0 0.0
  %81 = vmatprep.subr.mxu0 0.0
  %82 = vmatpush1.msra.mxu0 0.0
  %83 = vmatprep.subr.mxu0 0.0
  %84 = vmatpush1.msra.mxu0 0.0
  %85 = vmatprep.subr.mxu0 0.0
  %86 = vmatpush1.msra.mxu0 0.0
  %87 = vmatprep.subr.mxu0 0.0
  %88 = vmatpush1.msra.mxu0 0.0
  %89 = vmatprep.subr.mxu0 0.0
  %90 = vmatpush1.msra.mxu0 0.0
  %91 = vmatprep.subr.mxu0 0.0
  %92 = vmatpush1.msra.mxu0 0.0
  %93 = vmatprep.subr.mxu0 0.0
  %94 = vmatpush1.msra.mxu0 0.0
  %95 = vmatprep.subr.mxu0 0.0
  %96 = vmatpush1.msra.mxu0 0.0
  %97 = vmatprep.subr.mxu0 0.0
  %98 = vmatpush1.msra.mxu0 0.0
  %99 = vmatprep.subr.mxu0 0.0
  %100 = vmatpush1.msra.mxu0 0.0
  %101 = vmatprep.subr.mxu0 0.0
  %102 = vmatpush1.msra.mxu0 0.0
  %103 = vmatprep.subr.mxu0 0.0
  %104 = vmatpush1.msra.mxu0 0.0
  %105 = vmatprep.subr.mxu0 0.0
  %106 = vmatpush1.msra.mxu0 0.0
  %107 = vmatprep.mubr.f32.mxu0 0.0
  %108 = vmatmul.mubr.f32.gmra.mrb[0].mxu0 %v37
  %v109 = vpop.f32.mrb[0].mxu0
  %v110 = vadd.f32 %v33, %v109
  %v111 = vpop.f32.mrb[0].mxu0
  %112 = vdwg.mxu0
  %v113 = vmax.f32 %v110, 0.0
  %v114 = vld [vmem:[%s3] sm:$0xff]
  %v115 = vld [vmem:[%s3 + $0x8] sm:$0xff]
  %v116 = vld [vmem:[%s3 + $0x10] sm:$0xff]
  %v117 = vld [vmem:[%s3 + $0x18] sm:$0xff]
  %v118 = vld [vmem:[%s4] sm:$0x1]
  %v120 = vlaneseq
  %v121 = vshrl.u32 %v120, 7
  %v122 = vsub.s32 0, %v121
  %v123 = vrot.slane %v118, %v122
  %vm125 = vcmask 261120
  %v127 = vsel %vm125, %v113, 0
  %129 = vmatprep.subr.mxu0 0.0
  %130 = vmatpush1.msra.mxu0 %v114
  %131 = vmatprep.subr.mxu0 0.0
  %132 = vmatpush1.msra.mxu0 %v115
  %133 = vmatprep.subr.mxu0 0.0
  %134 = vmatpush1.msra.mxu0 %v116
  %135 = vmatprep.subr.mxu0 0.0
  %136 = vmatpush1.msra.mxu0 %v117
  %137 = vmatprep.subr.mxu0 0.0
  %138 = vmatpush1.msra.mxu0 0.0
  %139 = vmatprep.subr.mxu0 0.0
  %140 = vmatpush1.msra.mxu0 0.0
  %141 = vmatprep.subr.mxu0 0.0
  %142 = vmatpush1.msra.mxu0 0.0
  %143 = vmatprep.subr.mxu0 0.0
  %144 = vmatpush1.msra.mxu0 0.0
  %145 = vmatprep.subr.mxu0 0.0
  %146 = vmatpush1.msra.mxu0 0.0
  %147 = vmatprep.subr.mxu0 0.0
  %148 = vmatpush1.msra.mxu0 0.0
  %149 = vmatprep.subr.mxu0 0.0
  %150 = vmatpush1.msra.mxu0 0.0
  %151 = vmatprep.subr.mxu0 0.0
  %152 = vmatpush1.msra.mxu0 0.0
  %153 = vmatprep.subr.mxu0 0.0
  %154 = vmatpush1.msra.mxu0 0.0
  %155 = vmatprep.subr.mxu0 0.0
  %156 = vmatpush1.msra.mxu0 0.0
  %157 = vmatprep.subr.mxu0 0.0
  %158 = vmatpush1.msra.mxu0 0.0
  %159 = vmatprep.subr.mxu0 0.0
  %160 = vmatpush1.msra.mxu0 0.0
  %161 = vmatprep.subr.mxu0 0.0
  %162 = vmatpush1.msra.mxu0 0.0
  %163 = vmatprep.subr.mxu0 0.0
  %164 = vmatpush1.msra.mxu0 0.0
  %165 = vmatprep.subr.mxu0 0.0
  %166 = vmatpush1.msra.mxu0 0.0
  %167 = vmatprep.subr.mxu0 0.0
  %168 = vmatpush1.msra.mxu0 0.0
  %169 = vmatprep.subr.mxu0 0.0
  %170 = vmatpush1.msra.mxu0 0.0
  %171 = vmatprep.subr.mxu0 0.0
  %172 = vmatpush1.msra.mxu0 0.0
  %173 = vmatprep.subr.mxu0 0.0
  %174 = vmatpush1.msra.mxu0 0.0
  %175 = vmatprep.subr.mxu0 0.0
  %176 = vmatpush1.msra.mxu0 0.0
  %177 = vmatprep.subr.mxu0 0.0
  %178 = vmatpush1.msra.mxu0 0.0
  %179 = vmatprep.subr.mxu0 0.0
  %180 = vmatpush1.msra.mxu0 0.0
  %181 = vmatprep.subr.mxu0 0.0
  %182 = vmatpush1.msra.mxu0 0.0
  %183 = vmatprep.subr.mxu0 0.0
  %184 = vmatpush1.msra.mxu0 0.0
  %185 = vmatprep.subr.mxu0 0.0
  %186 = vmatpush1.msra.mxu0 0.0
  %187 = vmatprep.subr.mxu0 0.0
  %188 = vmatpush1.msra.mxu0 0.0
  %189 = vmatprep.subr.mxu0 0.0
  %190 = vmatpush1.msra.mxu0 0.0
  %191 = vmatprep.subr.mxu0 0.0
  %192 = vmatpush1.msra.mxu0 0.0
  %193 = vmatprep.mubr.f32.mxu0 0.0
  %194 = vmatmul.mubr.f32.gmra.mrb[0].mxu0 %v127
  %v195 = vpop.f32.mrb[0].mxu0
  %v196 = vadd.f32 %v123, %v195
  %v197 = vpop.f32.mrb[0].mxu0
  %198 = vdwg.mxu0
  %v199 = vmax.f32 %v196, 0.0
  %v200 = vld [vmem:[%s5] sm:$0xff]
  %v201 = vld [vmem:[%s5 + $0x8] sm:$0xff]
  %v202 = vld [vmem:[%s5 + $0x10] sm:$0xff]
  %v203 = vld [vmem:[%s5 + $0x18] sm:$0xff]
  %v204 = vld [vmem:[%s5 + $0x20] sm:$0xff]
  %v205 = vld [vmem:[%s5 + $0x28] sm:$0xff]
  %v206 = vld [vmem:[%s5 + $0x30] sm:$0xff]
  %v207 = vld [vmem:[%s5 + $0x38] sm:$0xff]
  %v208 = vld [vmem:[%s6] sm:$0x1]
  %v210 = vlaneseq
  %v211 = vshrl.u32 %v210, 7
  %v212 = vsub.s32 0, %v211
  %v213 = vrot.slane %v208, %v212
  %vm215 = vcmask 523264
  %v217 = vsel %vm215, %v199, 0
  %219 = vmatprep.subr.mxu0 0.0
  %220 = vmatpush1.msra.mxu0 %v200
  %221 = vmatprep.subr.mxu0 0.0
  %222 = vmatpush1.msra.mxu0 %v201
  %223 = vmatprep.subr.mxu0 0.0
  %224 = vmatpush1.msra.mxu0 %v202
  %225 = vmatprep.subr.mxu0 0.0
  %226 = vmatpush1.msra.mxu0 %v203
  %227 = vmatprep.subr.mxu0 0.0
  %228 = vmatpush1.msra.mxu0 %v204
  %229 = vmatprep.subr.mxu0 0.0
  %230 = vmatpush1.msra.mxu0 %v205
  %231 = vmatprep.subr.mxu0 0.0
  %232 = vmatpush1.msra.mxu0 %v206
  %233 = vmatprep.subr.mxu0 0.0
  %234 = vmatpush1.msra.mxu0 %v207
  %235 = vmatprep.subr.mxu0 0.0
  %236 = vmatpush1.msra.mxu0 0.0
  %237 = vmatprep.subr.mxu0 0.0
  %238 = vmatpush1.msra.mxu0 0.0
  %239 = vmatprep.subr.mxu0 0.0
  %240 = vmatpush1.msra.mxu0 0.0
  %241 = vmatprep.subr.mxu0 0.0
  %242 = vmatpush1.msra.mxu0 0.0
  %243 = vmatprep.subr.mxu0 0.0
  %244 = vmatpush1.msra.mxu0 0.0
  %245 = vmatprep.subr.mxu0 0.0
  %246 = vmatpush1.msra.mxu0 0.0
  %247 = vmatprep.subr.mxu0 0.0
  %248 = vmatpush1.msra.mxu0 0.0
  %249 = vmatprep.subr.mxu0 0.0
  %250 = vmatpush1.msra.mxu0 0.0
  %251 = vmatprep.subr.mxu0 0.0
  %252 = vmatpush1.msra.mxu0 0.0
  %253 = vmatprep.subr.mxu0 0.0
  %254 = vmatpush1.msra.mxu0 0.0
  %255 = vmatprep.subr.mxu0 0.0
  %256 = vmatpush1.msra.mxu0 0.0
  %257 = vmatprep.subr.mxu0 0.0
  %258 = vmatpush1.msra.mxu0 0.0
  %259 = vmatprep.subr.mxu0 0.0
  %260 = vmatpush1.msra.mxu0 0.0
  %261 = vmatprep.subr.mxu0 0.0
  %262 = vmatpush1.msra.mxu0 0.0
  %263 = vmatprep.subr.mxu0 0.0
  %264 = vmatpush1.msra.mxu0 0.0
  %265 = vmatprep.subr.mxu0 0.0
  %266 = vmatpush1.msra.mxu0 0.0
  %267 = vmatprep.subr.mxu0 0.0
  %268 = vmatpush1.msra.mxu0 0.0
  %269 = vmatprep.subr.mxu0 0.0
  %270 = vmatpush1.msra.mxu0 0.0
  %271 = vmatprep.subr.mxu0 0.0
  %272 = vmatpush1.msra.mxu0 0.0
  %273 = vmatprep.subr.mxu0 0.0
  %274 = vmatpush1.msra.mxu0 0.0
  %275 = vmatprep.subr.mxu0 0.0
  %276 = vmatpush1.msra.mxu0 0.0
  %277 = vmatprep.subr.mxu0 0.0
  %278 = vmatpush1.msra.mxu0 0.0
  %279 = vmatprep.subr.mxu0 0.0
  %280 = vmatpush1.msra.mxu0 0.0
  %281 = vmatprep.subr.mxu0 0.0
  %282 = vmatpush1.msra.mxu0 0.0
  %283 = vmatprep.mubr.f32.mxu0 0.0
  %284 = vmatmul.mubr.f32.gmra.mrb[0].mxu0 %v217
  %v285 = vpop.f32.mrb[0].mxu0
  %v286 = vadd.f32 %v213, %v285
  %v287 = vpop.f32.mrb[0].mxu0
  %288 = vdwg.mxu0
  %vm289 = vcmask 15360
  %290 = vst.msk [vmem:[%s7] sm:$0xff] %vm289, %v286
  // Predicated region
  $region30: #{dqn_forward.1} parent=0 // pred_check
    _
  $region31: #{dqn_forward.1} parent=0 // pred_check_branch
    %292 = sbr.rel (0) target = $region33
  $region32: #{dqn_forward.1} parent=0 // pred_region
    _
  $region33: #{dqn_forward.1} parent=0 // pred_fallthru
    _
  // Predicated region
  $region34: #{dqn_forward.1} parent=0 // pred_check
    _
  $region35: #{dqn_forward.1} parent=0 // pred_check_branch
    %294 = sbr.rel (0) target = $region37
  $region36: #{dqn_forward.1} parent=0 // pred_region
    _
  $region37: #{dqn_forward.1} parent=0 // pred_fallthru
    _

</llo_original>
